<compile_context>
chip_gen: v5e
topology: v5e:2x2
jax: 0.10.0
libtpu: 0.0.40
codegen_flags: <defaults>
</compile_context>

<pallas_src>
import jax
import jax.numpy as jnp
from jax.experimental import pallas as pl
from jax.experimental.pallas import tpu as pltpu


# ----------------------------- Pallas kernel -----------------------------
def _make_kernel(H):
    def kernel(x_ref, w1_ref, w2_ref, b_ref, o_ref):
        """Fused conv1+bn1+relu -> conv2+bn2+residual+relu on a row block.

        x_ref : (M, WC)     f32   lane-packed rows, M = images_per_step * H
        w1_ref: (3, WC, WC) bf16  banded conv1 weights (BN1 scale folded in)
        w2_ref: (3, WC, WC) bf16  banded conv2 weights (BN2 scale folded in)
        b_ref : (2, WC)     f32   [bias1, bias2] tiled over W
        o_ref : (M, WC)     f32
        """
        X = x_ref[...]                              # (M, WC) f32
        M, WC = X.shape

        # Per-image H-boundary masks (pad=1 in the H direction). Because H
        # divides M these also cover the circular-roll wrap at block edges.
        row_in_img = jax.lax.broadcasted_iota(jnp.int32, (M, WC), 0) % H
        top = row_in_img == 0          # rows whose (h-1) neighbor is padding
        bot = row_in_img == H - 1      # rows whose (h+1) neighbor is padding

        def conv3(act_f32, w_ref):
            a = act_f32.astype(jnp.bfloat16)        # cast once, reuse 3x
            t0 = jnp.dot(a, w_ref[0], preferred_element_type=jnp.float32)
            t1 = jnp.dot(a, w_ref[1], preferred_element_type=jnp.float32)
            t2 = jnp.dot(a, w_ref[2], preferred_element_type=jnp.float32)
            # out[h] = t0[h-1] + t1[h] + t2[h+1]: shift OUTPUTS with sublane
            # rolls (XLU) and zero the per-image boundary rows (VPU select).
            up = jnp.where(top, 0.0, pltpu.roll(t0, shift=1, axis=0))
            dn = jnp.where(bot, 0.0, pltpu.roll(t2, shift=M - 1, axis=0))
            return t1 + up + dn

        # conv1 + bn1 (scale folded into weights) + relu  -- stays in VMEM/vregs
        y1 = jnp.maximum(conv3(X, w1_ref) + b_ref[0], 0.0)
        # conv2 + bn2 + residual + relu; re-read x_ref (resident VMEM block)
        y2 = conv3(y1, w2_ref) + b_ref[1] + x_ref[...]
        o_ref[...] = jnp.maximum(y2, 0.0)

    return kernel


# ----------------------------- weight prep (hoisted, one-off) -----------------------------
def _fold_bn(gamma, beta, mean, var, eps=1e-5):
    scale = gamma / jnp.sqrt(var + eps)
    bias = beta - mean * scale
    return scale, bias


def _make_banded(w_hwio, W, scale):
    """(3,3,Cin,Cout) SAME-pad conv weight -> (3, W*Cin, W*Cout) banded matrices.

    band[dy][(w_in*Cin + ci), (w_out*Cout + co)] = w[dy, dx, ci, co] * scale[co]
      with w_in = w_out + dx - 1 (entries outside [0,W) stay zero => width pad=1).
    The BN per-output-channel scale is folded into the columns.
    """
    w = w_hwio * scale[None, None, None, :]
    mats = []
    for dy in range(3):
        acc = None
        for dx in range(3):
            shift = jnp.eye(W, k=1 - dx, dtype=w.dtype)   # w_out = w_in + 1 - dx
            blk = jnp.kron(shift, w[dy, dx])              # (W*Cin, W*Cout)
            acc = blk if acc is None else acc + blk
        mats.append(acc)
    return jnp.stack(mats, axis=0)


def prepare_basic_block(params, W):
    """Build kernel-ready weights ONCE per model (not per forward call)."""
    s1, b1 = _fold_bn(params["bn1_gamma"], params["bn1_beta"],
                      params["bn1_mean"], params["bn1_var"])
    s2, b2 = _fold_bn(params["bn2_gamma"], params["bn2_beta"],
                      params["bn2_mean"], params["bn2_var"])
    w1 = jnp.transpose(params["conv1_w"], (2, 3, 1, 0))   # OIHW -> HWIO
    w2 = jnp.transpose(params["conv2_w"], (2, 3, 1, 0))
    w1b = _make_banded(w1, W, s1).astype(jnp.bfloat16)    # (3, WC, WC)
    w2b = _make_banded(w2, W, s2).astype(jnp.bfloat16)
    bias = jnp.stack([jnp.tile(b1, W), jnp.tile(b2, W)]).astype(jnp.float32)
    return {"w1b": w1b, "w2b": w2b, "bias": bias}


# ----------------------------- forward wrapper -----------------------------
def _choose_images_per_step(N, H, max_rows=256):
    """Fold as many images as possible into each step (bigger matmul M) while
    bounding per-step rows and preferring an even grid (v7x: 2 TensorCores)."""
    nb = max(1, min(N, max_rows // max(H, 1)))
    while N % nb:
        nb -= 1
    if (N // nb) % 2:                       # try to make the grid even
        for cand in range(nb, 0, -1):
            if N % cand == 0 and (N // cand) % 2 == 0:
                nb = cand
                break
    return nb


@jax.jit
def basic_block_forward(x_nchw, prepared):
    """BasicBlock forward. x_nchw: (N, C, H, W) float32. Returns (N, C, H, W)."""
    N, C, H, W = x_nchw.shape
    WC = W * C
    # Fail loudly on configurations this lane-dense kernel does not cover.
    assert WC % 128 == 0, "W*C must be a multiple of 128 (lane-dense packing)"
    assert H % 8 == 0, "H must be a multiple of 8 (sublane alignment)"

    nb = _choose_images_per_step(N, H)
    grid_n = N // nb
    Mb = nb * H

    # Boundary layout op only (module contract is NCHW): NCHW -> (N*H, W*C).
    x_rows = jnp.transpose(x_nchw, (0, 2, 3, 1)).reshape(N * H, WC)

    out_rows = pl.pallas_call(
        _make_kernel(H),
        out_shape=jax.ShapeDtypeStruct((N * H, WC), jnp.float32),
        grid_spec=pltpu.PrefetchScalarGridSpec(
            num_scalar_prefetch=0,
            grid=(grid_n,),
            in_specs=[
                pl.BlockSpec((Mb, WC), lambda n: (n, 0)),
                pl.BlockSpec((3, WC, WC), lambda n: (0, 0, 0)),
                pl.BlockSpec((3, WC, WC), lambda n: (0, 0, 0)),
                pl.BlockSpec((2, WC), lambda n: (0, 0)),
            ],
            out_specs=pl.BlockSpec((Mb, WC), lambda n: (n, 0)),
        ),
        compiler_params=pltpu.CompilerParams(
            dimension_semantics=("parallel",)),   # v7x: shard steps over 2 TCs
    )(x_rows, prepared["w1b"], prepared["w2b"], prepared["bias"])

    # lane-packed -> NCHW boundary
    return jnp.transpose(out_rows.reshape(N, H, W, C), (0, 3, 1, 2))


# ----------------------------- reference (pure JAX) -----------------------------
def _ref_forward(x_nchw, params):
    def conv(x, w):
        return jax.lax.conv_general_dilated(
            x, w, window_strides=(1, 1), padding=((1, 1), (1, 1)),
            dimension_numbers=("NCHW", "OIHW", "NCHW"),
            precision=jax.lax.Precision.HIGHEST)

    def bn(x, g, b, m, v, eps=1e-5):
        scale = (g / jnp.sqrt(v + eps)).reshape(1, -1, 1, 1)
        bias = (b - m * g / jnp.sqrt(v + eps)).reshape(1, -1, 1, 1)
        return x * scale + bias

    out = conv(x_nchw, params["conv1_w"])
    out = bn(out, params["bn1_gamma"], params["bn1_beta"],
             params["bn1_mean"], params["bn1_var"])
    out = jnp.maximum(out, 0.0)
    out = conv(out, params["conv2_w"])
    out = bn(out, params["bn2_gamma"], params["bn2_beta"],
             params["bn2_mean"], params["bn2_var"])
    out = out + x_nchw
    return jnp.maximum(out, 0.0)


if __name__ == "__main__":
    # inputchannel == outputchannel, stride=1, downsample=None (module defaults).
    # W*C = 128 -> fully lane-dense blocks.
    N, C, H, W = 2, 8, 16, 16
    key = jax.random.PRNGKey(0)
    k = jax.random.split(key, 8)

    x = jax.random.normal(k[0], (N, C, H, W), dtype=jnp.float32)
    params = {
        "conv1_w": 0.1 * jax.random.normal(k[1], (C, C, 3, 3), dtype=jnp.float32),
        "conv2_w": 0.1 * jax.random.normal(k[2], (C, C, 3, 3), dtype=jnp.float32),
        "bn1_gamma": 1.0 + 0.1 * jax.random.normal(k[3], (C,), dtype=jnp.float32),
        "bn1_beta": 0.05 * jax.random.normal(k[4], (C,), dtype=jnp.float32),
        "bn1_mean": 0.1 * jax.random.normal(k[5], (C,), dtype=jnp.float32),
        "bn1_var": jnp.abs(1.0 + 0.1 * jax.random.normal(k[6], (C,), dtype=jnp.float32)),
        "bn2_gamma": 1.0 + 0.1 * jax.random.normal(k[7], (C,), dtype=jnp.float32),
        "bn2_beta": jnp.linspace(-0.1, 0.1, C, dtype=jnp.float32),
        "bn2_mean": jnp.linspace(-0.05, 0.05, C, dtype=jnp.float32),
        "bn2_var": jnp.linspace(0.9, 1.1, C, dtype=jnp.float32),
    }

    # Weight prep hoisted out of the forward path (one-off per model).
    prepared = jax.tree_util.tree_map(jax.block_until_ready,
                                      prepare_basic_block(params, W))

    out = jax.block_until_ready(basic_block_forward(x, prepared))
    ref = jax.block_until_ready(_ref_forward(x, params))

    assert out.shape == (N, C, H, W), out.shape
    # Kernel uses bf16 MXU operands (with BN scale folded into them) and f32
    # accumulation; reference is full f32 HIGHEST.
    max_err = float(jnp.max(jnp.abs(out - ref)))
    assert max_err < 5e-2, f"mismatch vs reference: {max_err}"
    print("KERNEL_OK")
</pallas_src>

<mosaic_0001>
module attributes {stable_mosaic.version = 11 : i64} {
  func.func @kernel(%arg0: i32, %arg1: memref<16x128xf32, #tpu.memory_space<vmem>>, %arg2: memref<3x128x128xbf16, #tpu.memory_space<vmem>>, %arg3: memref<3x128x128xbf16, #tpu.memory_space<vmem>>, %arg4: memref<2x128xf32, #tpu.memory_space<vmem>>, %arg5: memref<16x128xf32, #tpu.memory_space<vmem>>) attributes {dimension_semantics = [#tpu.dimension_semantics<parallel>], iteration_bounds = array<i64: 2>, scalar_prefetch = 0 : i64, scratch_operands = 0 : i64, tpu.core_type = #tpu.core_type<tc>, window_params = [{transform_indices = @transform_0, window_bounds = array<i64: 16, 128>}, {pipeline_mode = #tpu.pipeline_mode<synchronous>, transform_indices = @transform_1, window_bounds = array<i64: 3, 128, 128>}, {pipeline_mode = #tpu.pipeline_mode<synchronous>, transform_indices = @transform_2, window_bounds = array<i64: 3, 128, 128>}, {pipeline_mode = #tpu.pipeline_mode<synchronous>, transform_indices = @transform_3, window_bounds = array<i64: 2, 128>}, {transform_indices = @transform_4, window_bounds = array<i64: 16, 128>}]} {
    %c0 = arith.constant 0 : index
    %c0_0 = arith.constant 0 : index
    %0 = vector.load %arg1[%c0, %c0_0] : memref<16x128xf32, #tpu.memory_space<vmem>>, vector<16x128xf32>
    %1 = tpu.iota {dimensions = array<i32: 0>} : vector<16x128xi32>
    %c16_i32 = arith.constant 16 : i32
    %c0_i32 = arith.constant 0 : i32
    %2 = arith.cmpi eq, %c16_i32, %c0_i32 : i32
    %c1_i32 = arith.constant 1 : i32
    %3 = arith.select %2, %c1_i32, %c16_i32 : i32
    %4 = vector.broadcast %3 : i32 to vector<16x128xi32>
    %5 = arith.remsi %1, %4 : vector<16x128xi32>
    %c0_i32_1 = arith.constant 0 : i32
    %6 = vector.broadcast %c0_i32_1 : i32 to vector<16x128xi32>
    %7 = arith.cmpi ne, %5, %6 : vector<16x128xi32>
    %c0_i32_2 = arith.constant 0 : i32
    %8 = vector.broadcast %c0_i32_2 : i32 to vector<16x128xi32>
    %9 = arith.cmpi slt, %5, %8 : vector<16x128xi32>
    %c0_i32_3 = arith.constant 0 : i32
    %10 = arith.cmpi slt, %3, %c0_i32_3 : i32
    %11 = vector.broadcast %10 : i1 to vector<16x128xi1>
    %12 = vector.broadcast %11 : vector<16x128xi1> to vector<16x128xi1>
    %13 = arith.xori %9, %12 : vector<16x128xi1>
    %14 = arith.andi %13, %7 : vector<16x128xi1>
    %15 = vector.broadcast %3 : i32 to vector<16x128xi32>
    %16 = arith.addi %5, %15 : vector<16x128xi32>
    %17 = arith.select %14, %16, %5 : vector<16x128xi1>, vector<16x128xi32>
    %c0_i32_4 = arith.constant 0 : i32
    %18 = vector.broadcast %c0_i32_4 : i32 to vector<16x128xi32>
    %19 = arith.cmpi eq, %17, %18 : vector<16x128xi32>
    %c15_i32 = arith.constant 15 : i32
    %20 = vector.broadcast %c15_i32 : i32 to vector<16x128xi32>
    %21 = arith.cmpi eq, %17, %20 : vector<16x128xi32>
    %22 = arith.truncf %0 : vector<16x128xf32> to vector<16x128xbf16>
    %c0_5 = arith.constant 0 : index
    %c0_6 = arith.constant 0 : index
    %c0_7 = arith.constant 0 : index
    %23 = vector.load %arg2[%c0_5, %c0_6, %c0_7] : memref<3x128x128xbf16, #tpu.memory_space<vmem>>, vector<1x128x128xbf16>
    %24 = vector.shape_cast %23 : vector<1x128x128xbf16> to vector<128x128xbf16>
    %cst = arith.constant dense<0.000000e+00> : vector<16x128xf32>
    %25 = tpu.matmul %22, %24, %cst {dimension_numbers = #tpu.dot_dimension_numbers<[1], [0], [0], [1], [0, 0, 1, 1], [], []>} : vector<16x128xbf16>, vector<128x128xbf16>, vector<16x128xf32> -> vector<16x128xf32>
    %c1 = arith.constant 1 : index
    %c0_8 = arith.constant 0 : index
    %c0_9 = arith.constant 0 : index
    %26 = vector.load %arg2[%c1, %c0_8, %c0_9] : memref<3x128x128xbf16, #tpu.memory_space<vmem>>, vector<1x128x128xbf16>
    %27 = vector.shape_cast %26 : vector<1x128x128xbf16> to vector<128x128xbf16>
    %cst_10 = arith.constant dense<0.000000e+00> : vector<16x128xf32>
    %28 = tpu.matmul %22, %27, %cst_10 {dimension_numbers = #tpu.dot_dimension_numbers<[1], [0], [0], [1], [0, 0, 1, 1], [], []>} : vector<16x128xbf16>, vector<128x128xbf16>, vector<16x128xf32> -> vector<16x128xf32>
    %c2 = arith.constant 2 : index
    %c0_11 = arith.constant 0 : index
    %c0_12 = arith.constant 0 : index
    %29 = vector.load %arg2[%c2, %c0_11, %c0_12] : memref<3x128x128xbf16, #tpu.memory_space<vmem>>, vector<1x128x128xbf16>
    %30 = vector.shape_cast %29 : vector<1x128x128xbf16> to vector<128x128xbf16>
    %cst_13 = arith.constant dense<0.000000e+00> : vector<16x128xf32>
    %31 = tpu.matmul %22, %30, %cst_13 {dimension_numbers = #tpu.dot_dimension_numbers<[1], [0], [0], [1], [0, 0, 1, 1], [], []>} : vector<16x128xbf16>, vector<128x128xbf16>, vector<16x128xf32> -> vector<16x128xf32>
    %c1_i32_14 = arith.constant 1 : i32
    %32 = tpu.dynamic_rotate %25 by %c1_i32_14 dim 0 : vector<16x128xf32>, i32 -> vector<16x128xf32>
    %cst_15 = arith.constant 0.000000e+00 : f32
    %33 = vector.broadcast %cst_15 : f32 to vector<16x128xf32>
    %34 = arith.select %19, %33, %32 : vector<16x128xi1>, vector<16x128xf32>
    %c15_i32_16 = arith.constant 15 : i32
    %35 = tpu.dynamic_rotate %31 by %c15_i32_16 dim 0 : vector<16x128xf32>, i32 -> vector<16x128xf32>
    %cst_17 = arith.constant 0.000000e+00 : f32
    %36 = vector.broadcast %cst_17 : f32 to vector<16x128xf32>
    %37 = arith.select %21, %36, %35 : vector<16x128xi1>, vector<16x128xf32>
    %38 = arith.addf %28, %34 : vector<16x128xf32>
    %39 = arith.addf %38, %37 : vector<16x128xf32>
    %c0_18 = arith.constant 0 : index
    %c0_19 = arith.constant 0 : index
    %40 = vector.load %arg4[%c0_18, %c0_19] : memref<2x128xf32, #tpu.memory_space<vmem>>, vector<1x128xf32>
    %41 = vector.shape_cast %40 : vector<1x128xf32> to vector<128xf32>
    %42 = vector.shape_cast %41 : vector<128xf32> to vector<1x128xf32>
    %43 = vector.broadcast %42 : vector<1x128xf32> to vector<16x128xf32>
    %44 = arith.addf %39, %43 : vector<16x128xf32>
    %cst_20 = arith.constant 0.000000e+00 : f32
    %45 = vector.broadcast %cst_20 : f32 to vector<16x128xf32>
    %46 = arith.maximumf %44, %45 : vector<16x128xf32>
    %47 = arith.truncf %46 : vector<16x128xf32> to vector<16x128xbf16>
    %c0_21 = arith.constant 0 : index
    %c0_22 = arith.constant 0 : index
    %c0_23 = arith.constant 0 : index
    %48 = vector.load %arg3[%c0_21, %c0_22, %c0_23] : memref<3x128x128xbf16, #tpu.memory_space<vmem>>, vector<1x128x128xbf16>
    %49 = vector.shape_cast %48 : vector<1x128x128xbf16> to vector<128x128xbf16>
    %cst_24 = arith.constant dense<0.000000e+00> : vector<16x128xf32>
    %50 = tpu.matmul %47, %49, %cst_24 {dimension_numbers = #tpu.dot_dimension_numbers<[1], [0], [0], [1], [0, 0, 1, 1], [], []>} : vector<16x128xbf16>, vector<128x128xbf16>, vector<16x128xf32> -> vector<16x128xf32>
    %c1_25 = arith.constant 1 : index
    %c0_26 = arith.constant 0 : index
    %c0_27 = arith.constant 0 : index
    %51 = vector.load %arg3[%c1_25, %c0_26, %c0_27] : memref<3x128x128xbf16, #tpu.memory_space<vmem>>, vector<1x128x128xbf16>
    %52 = vector.shape_cast %51 : vector<1x128x128xbf16> to vector<128x128xbf16>
    %cst_28 = arith.constant dense<0.000000e+00> : vector<16x128xf32>
    %53 = tpu.matmul %47, %52, %cst_28 {dimension_numbers = #tpu.dot_dimension_numbers<[1], [0], [0], [1], [0, 0, 1, 1], [], []>} : vector<16x128xbf16>, vector<128x128xbf16>, vector<16x128xf32> -> vector<16x128xf32>
    %c2_29 = arith.constant 2 : index
    %c0_30 = arith.constant 0 : index
    %c0_31 = arith.constant 0 : index
    %54 = vector.load %arg3[%c2_29, %c0_30, %c0_31] : memref<3x128x128xbf16, #tpu.memory_space<vmem>>, vector<1x128x128xbf16>
    %55 = vector.shape_cast %54 : vector<1x128x128xbf16> to vector<128x128xbf16>
    %cst_32 = arith.constant dense<0.000000e+00> : vector<16x128xf32>
    %56 = tpu.matmul %47, %55, %cst_32 {dimension_numbers = #tpu.dot_dimension_numbers<[1], [0], [0], [1], [0, 0, 1, 1], [], []>} : vector<16x128xbf16>, vector<128x128xbf16>, vector<16x128xf32> -> vector<16x128xf32>
    %c1_i32_33 = arith.constant 1 : i32
    %57 = tpu.dynamic_rotate %50 by %c1_i32_33 dim 0 : vector<16x128xf32>, i32 -> vector<16x128xf32>
    %cst_34 = arith.constant 0.000000e+00 : f32
    %58 = vector.broadcast %cst_34 : f32 to vector<16x128xf32>
    %59 = arith.select %19, %58, %57 : vector<16x128xi1>, vector<16x128xf32>
    %c15_i32_35 = arith.constant 15 : i32
    %60 = tpu.dynamic_rotate %56 by %c15_i32_35 dim 0 : vector<16x128xf32>, i32 -> vector<16x128xf32>
    %cst_36 = arith.constant 0.000000e+00 : f32
    %61 = vector.broadcast %cst_36 : f32 to vector<16x128xf32>
    %62 = arith.select %21, %61, %60 : vector<16x128xi1>, vector<16x128xf32>
    %63 = arith.addf %53, %59 : vector<16x128xf32>
    %64 = arith.addf %63, %62 : vector<16x128xf32>
    %c1_37 = arith.constant 1 : index
    %c0_38 = arith.constant 0 : index
    %65 = vector.load %arg4[%c1_37, %c0_38] : memref<2x128xf32, #tpu.memory_space<vmem>>, vector<1x128xf32>
    %66 = vector.shape_cast %65 : vector<1x128xf32> to vector<128xf32>
    %67 = vector.shape_cast %66 : vector<128xf32> to vector<1x128xf32>
    %68 = vector.broadcast %67 : vector<1x128xf32> to vector<16x128xf32>
    %69 = arith.addf %64, %68 : vector<16x128xf32>
    %c0_39 = arith.constant 0 : index
    %c0_40 = arith.constant 0 : index
    %70 = vector.load %arg1[%c0_39, %c0_40] : memref<16x128xf32, #tpu.memory_space<vmem>>, vector<16x128xf32>
    %71 = arith.addf %69, %70 : vector<16x128xf32>
    %cst_41 = arith.constant 0.000000e+00 : f32
    %72 = vector.broadcast %cst_41 : f32 to vector<16x128xf32>
    %73 = arith.maximumf %71, %72 : vector<16x128xf32>
    %c0_42 = arith.constant 0 : index
    %c0_43 = arith.constant 0 : index
    %74 = vector.load %arg5[%c0_42, %c0_43] : memref<16x128xf32, #tpu.memory_space<vmem>>, vector<16x128xf32>
    tpu.vector_store %arg5[%c0_42, %c0_43], %73 {strides = array<i32>} : memref<16x128xf32, #tpu.memory_space<vmem>>, vector<16x128xf32>,
    return
  }
  func.func @transform_0(%arg0: i32) -> (i32, i32) {
    %c0_i32 = arith.constant 0 : i32
    %c0_i32_0 = arith.constant 0 : i32
    return %arg0, %c0_i32 : i32, i32
  }
  func.func @transform_1(%arg0: i32) -> (i32, i32, i32) {
    %c0_i32 = arith.constant 0 : i32
    %c0_i32_0 = arith.constant 0 : i32
    %c0_i32_1 = arith.constant 0 : i32
    %c0_i32_2 = arith.constant 0 : i32
    return %c0_i32, %c0_i32_0, %c0_i32_1 : i32, i32, i32
  }
  func.func @transform_2(%arg0: i32) -> (i32, i32, i32) {
    %c0_i32 = arith.constant 0 : i32
    %c0_i32_0 = arith.constant 0 : i32
    %c0_i32_1 = arith.constant 0 : i32
    %c0_i32_2 = arith.constant 0 : i32
    return %c0_i32, %c0_i32_0, %c0_i32_1 : i32, i32, i32
  }
  func.func @transform_3(%arg0: i32) -> (i32, i32) {
    %c0_i32 = arith.constant 0 : i32
    %c0_i32_0 = arith.constant 0 : i32
    %c0_i32_1 = arith.constant 0 : i32
    return %c0_i32, %c0_i32_0 : i32, i32
  }
  func.func @transform_4(%arg0: i32) -> (i32, i32) {
    %c0_i32 = arith.constant 0 : i32
    %c0_i32_0 = arith.constant 0 : i32
    return %arg0, %c0_i32 : i32, i32
  }
}

</mosaic_0001>

<llo_original>
// kernel: basic_block_forward.1
$region0: #{basic_block_forward.1}
  #allocation0 [shape = 'u32[]', space=smem, size = 0x4, offset = 0x4, fixed_abs, tag = 'smem constant byte address 0x4 - core index']
  #allocation1 [shape = 'u32[72,128]{1,0:T(1,128)}', space=vmem, size = 0x9000, scoped, tag = 'internal scratch']
  %s0 = inlined_call_operand.vmem [shape: f32[32,128], index: 0, kind: input, shape index: {}]
  %s1 = inlined_call_operand.vmem [shape: bf16[3,128,128], index: 1, kind: input, shape index: {}]
  %s2 = inlined_call_operand.vmem [shape: bf16[3,128,128], index: 2, kind: input, shape index: {}]
  %s3 = inlined_call_operand.vmem [shape: f32[2,128], index: 3, kind: input, shape index: {}]
  %s4 = inlined_call_operand.vmem [shape: f32[32,128], index: 4, kind: output, shape index: {}]
  %s5 = sld [smem:[#allocation0]]
  $region49: #{basic_block_forward.1} parent=0
    _
  %s7 = ssub.s32 1, %s5
  %s8 = scalar_select 0, %s7, %s5
  loop: start=0, step=1, limit=4
  $region2: #{basic_block_forward.1} parent=0 // loop_pre_header
    _
  $region3: #{basic_block_forward.1} parent=0 // loop_header
    %s10 = sphi 0, %s14
    %p11 = scmp.ge.s32.totalorder %s10, 4
    %s20 = sphi 0, %s22
    %s23 = sphi 0, %s20
    %s24 = sphi 0, %s23
    %s40 = sphi 0, %s24
    %s44 = sphi 0, %s44
    %s46 = sphi 0, %s44
    %s47 = sphi 0, %s46
    %s61 = sphi 0, %s47
    %s65 = sphi 0, %s65
    %s67 = sphi 0, %s65
    %s68 = sphi 0, %s67
    %s82 = sphi 0, %s68
    %s86 = sphi 0, %s86
    %s88 = sphi 0, %s86
    %s89 = sphi 0, %s88
    %s103 = sphi 0, %s89
    %s109 = sphi 0, %s111
    %s112 = sphi 0, %s109
    %s113 = sphi 0, %s112
    %s129 = sphi 0, %s113
  $region4: #{basic_block_forward.1} parent=0 // loop_header_branch
    %13 = sbr.rel (%p11) target = $region8
  $region5: #{basic_block_forward.1} parent=0 // loop_body
    %s15 = ssub.s32 %s10, 1
    %s16 = ssub.s32 %s10, 2
    %s17 = sadd.s32 %s10, 1
    %s18 = ssub.s32 %s10, %s17
    %p19 = scmp.eq.s32.totalorder %s18, 0
    %s21 = sadd.s32 %s20, 1
    %s22 = scalar_select %p19, %s20, %s21
    %p25 = pneg %p19
    %p26 = scmp.eq.s32.totalorder %s10, 1
    %p27 = por %p25, %p26
    %p28 = scmp.ne.s32.totalorder %s20, %s23
    %p29 = scmp.eq.s32.totalorder %s10, 0
    %p30 = por %p28, %p29
    %p31 = scmp.ne.s32.totalorder %s20, %s23
    %p32 = scmp.eq.s32.totalorder %s15, 1
    %p33 = por %p31, %p32
    %p34 = scmp.ne.s32.totalorder %s23, %s24
    %p35 = scmp.eq.s32.totalorder %s15, 0
    %p36 = por %p34, %p35
    %p37 = scmp.ne.s32.totalorder %s23, %s24
    %p38 = scmp.eq.s32.totalorder %s16, 1
    %p39 = por %p37, %p38
    %p41 = scmp.ne.s32.totalorder %s24, %s40
    %p42 = scmp.eq.s32.totalorder %s16, 0
    %p43 = por %p41, %p42
    %s45 = sadd.s32 %s44, 1
    %p48 = scmp.eq.s32.totalorder %s10, 1
    %p49 = scmp.ne.s32.totalorder %s44, %s46
    %p50 = scmp.eq.s32.totalorder %s10, 0
    %p51 = por %p49, %p50
    %p52 = scmp.ne.s32.totalorder %s44, %s46
    %p53 = scmp.eq.s32.totalorder %s15, 1
    %p54 = por %p52, %p53
    %p55 = scmp.ne.s32.totalorder %s46, %s47
    %p56 = scmp.eq.s32.totalorder %s15, 0
    %p57 = por %p55, %p56
    %p58 = scmp.ne.s32.totalorder %s46, %s47
    %p59 = scmp.eq.s32.totalorder %s16, 1
    %p60 = por %p58, %p59
    %p62 = scmp.ne.s32.totalorder %s47, %s61
    %p63 = scmp.eq.s32.totalorder %s16, 0
    %p64 = por %p62, %p63
    %s66 = sadd.s32 %s65, 1
    %p69 = scmp.eq.s32.totalorder %s10, 1
    %p70 = scmp.ne.s32.totalorder %s65, %s67
    %p71 = scmp.eq.s32.totalorder %s10, 0
    %p72 = por %p70, %p71
    %p73 = scmp.ne.s32.totalorder %s65, %s67
    %p74 = scmp.eq.s32.totalorder %s15, 1
    %p75 = por %p73, %p74
    %p76 = scmp.ne.s32.totalorder %s67, %s68
    %p77 = scmp.eq.s32.totalorder %s15, 0
    %p78 = por %p76, %p77
    %p79 = scmp.ne.s32.totalorder %s67, %s68
    %p80 = scmp.eq.s32.totalorder %s16, 1
    %p81 = por %p79, %p80
    %p83 = scmp.ne.s32.totalorder %s68, %s82
    %p84 = scmp.eq.s32.totalorder %s16, 0
    %p85 = por %p83, %p84
    %s87 = sadd.s32 %s86, 1
    %p90 = scmp.eq.s32.totalorder %s10, 1
    %p91 = scmp.ne.s32.totalorder %s86, %s88
    %p92 = scmp.eq.s32.totalorder %s10, 0
    %p93 = por %p91, %p92
    %p94 = scmp.ne.s32.totalorder %s86, %s88
    %p95 = scmp.eq.s32.totalorder %s15, 1
    %p96 = por %p94, %p95
    %p97 = scmp.ne.s32.totalorder %s88, %s89
    %p98 = scmp.eq.s32.totalorder %s15, 0
    %p99 = por %p97, %p98
    %p100 = scmp.ne.s32.totalorder %s88, %s89
    %p101 = scmp.eq.s32.totalorder %s16, 1
    %p102 = por %p100, %p101
    %p104 = scmp.ne.s32.totalorder %s89, %s103
    %p105 = scmp.eq.s32.totalorder %s16, 0
    %p106 = por %p104, %p105
    %s107 = ssub.s32 %s10, %s17
    %p108 = scmp.eq.s32.totalorder %s107, 0
    %s110 = sadd.s32 %s109, 1
    %s111 = scalar_select %p108, %s109, %s110
    %p114 = pneg %p108
    %p115 = scmp.eq.s32.totalorder %s10, 1
    %p116 = por %p114, %p115
    %p117 = scmp.ne.s32.totalorder %s109, %s112
    %p118 = scmp.eq.s32.totalorder %s10, 0
    %p119 = por %p117, %p118
    %p120 = scmp.ne.s32.totalorder %s109, %s112
    %p121 = scmp.eq.s32.totalorder %s15, 1
    %p122 = por %p120, %p121
    %p123 = scmp.ne.s32.totalorder %s112, %s113
    %p124 = scmp.eq.s32.totalorder %s15, 0
    %p125 = por %p123, %p124
    %p126 = scmp.ne.s32.totalorder %s112, %s113
    %p127 = scmp.eq.s32.totalorder %s16, 1
    %p128 = por %p126, %p127
    %p130 = scmp.ne.s32.totalorder %s113, %s129
    %p131 = scmp.eq.s32.totalorder %s16, 0
    %p132 = por %p130, %p131
    %p133 = scmp.le.s32.totalorder 1, %s10
    %p134 = scmp.lt.s32.totalorder %s10, 3
    %p135 = pnand %p133, %p134
    %p136 = pneg %p135
    // Predicated region
    $region9: #{basic_block_forward.1} parent=5 // pred_check
      _
    $region10: #{basic_block_forward.1} parent=5 // pred_check_branch
      %138 = sbr.rel (%p135) target = $region12
    $region11: #{basic_block_forward.1} parent=5 // pred_region
      %s139 = ssub.s32 %s10, 1
      // Predicated region
      $region13: #{basic_block_forward.1} parent=11 // pred_check
        %p140 = pneg %p57
      $region14: #{basic_block_forward.1} parent=11 // pred_check_branch
        %142 = sbr.rel (%p140) target = $region16
      $region15: #{basic_block_forward.1} parent=11 // pred_region
        _
      $region16: #{basic_block_forward.1} parent=11 // pred_fallthru
        _
      // Predicated region
      $region17: #{basic_block_forward.1} parent=11 // pred_check
        %p143 = pneg %p78
      $region18: #{basic_block_forward.1} parent=11 // pred_check_branch
        %145 = sbr.rel (%p143) target = $region20
      $region19: #{basic_block_forward.1} parent=11 // pred_region
        _
      $region20: #{basic_block_forward.1} parent=11 // pred_fallthru
        _
      // Predicated region
      $region21: #{basic_block_forward.1} parent=11 // pred_check
        %p146 = pneg %p99
      $region22: #{basic_block_forward.1} parent=11 // pred_check_branch
        %148 = sbr.rel (%p146) target = $region24
      $region23: #{basic_block_forward.1} parent=11 // pred_region
        _
      $region24: #{basic_block_forward.1} parent=11 // pred_fallthru
        _
    $region12: #{basic_block_forward.1} parent=5 // pred_fallthru
      _
    %p149 = scmp.lt.s32.totalorder %s10, 2
    // Predicated region
    $region25: #{basic_block_forward.1} parent=5 // pred_check
      %p150 = pneg %p149
    $region26: #{basic_block_forward.1} parent=5 // pred_check_branch
      %152 = sbr.rel (%p150) target = $region28
    $region27: #{basic_block_forward.1} parent=5 // pred_region
      // Predicated region
      $region29: #{basic_block_forward.1} parent=27 // pred_check
        %p153 = pneg %p30
      $region30: #{basic_block_forward.1} parent=27 // pred_check_branch
        %155 = sbr.rel (%p153) target = $region32
      $region31: #{basic_block_forward.1} parent=27 // pred_region
        %s156 = smul.u32 2, %s10
        %p157 = scmp.lt.s32.totalorder %s156, 3
        %s158 = scalar_select %p157, %s156, 3
        %s159 = smul.addr %s158, 8
        %s160 = scalar_lea.vmem %s0, %s159
        %s161 = smul.u32 2, %s10
      $region32: #{basic_block_forward.1} parent=27 // pred_fallthru
        _
    $region28: #{basic_block_forward.1} parent=5 // pred_fallthru
      _
    %p162 = scmp.le.s32.totalorder 1, %s10
    %p163 = scmp.lt.s32.totalorder %s10, 3
    %p164 = pnand %p162, %p163
    %p165 = pneg %p164
    // Predicated region
    $region33: #{basic_block_forward.1} parent=5 // pred_check
      _
    $region34: #{basic_block_forward.1} parent=5 // pred_check_branch
      %167 = sbr.rel (%p164) target = $region36
    $region35: #{basic_block_forward.1} parent=5 // pred_region
      %s168 = ssub.s32 %s10, 1
      %s169 = smul.u32 2, %s15
      %p170 = scmp.lt.s32.totalorder %s169, 3
      %s171 = scalar_select %p170, %s169, 3
      %s172 = smul.addr %s171, 8
      %s173 = scalar_lea.vmem %s0, %s172
      %p174 = pneg %p36
      %p175 = pneg %p33
      %p176 = pneg %p57
      %p177 = pneg %p54
      %p178 = pneg %p78
      %p179 = pneg %p75
      %p180 = pneg %p99
      %p181 = pneg %p96
      %p182 = pneg %p125
      %p183 = pneg %p122
      %s184 = smul.u32 2, %s15
      %p185 = scmp.lt.s32.totalorder %s184, 3
      %s186 = scalar_select %p185, %s184, 3
      %s187 = smul.addr %s186, 8
      %s188 = scalar_lea.vmem %s4, %s187
      %s189 = smul.u32 2, %s15
      %p190 = scmp.lt.s32.totalorder %s189, 3
      %s191 = scalar_select %p190, %s189, 3
      %s192 = smul.addr %s191, 8
      %s193 = scalar_lea.vmem %s0, %s192
      %s194 = smul.u32 2, %s15
      %s195 = smul.u32 2, %s15
      %p196 = scmp.lt.s32.totalorder %s195, 3
      %s197 = scalar_select %p196, %s195, 3
      %s198 = smul.addr %s197, 8
      %s199 = scalar_lea.vmem %s4, %s198
      %s200 = smul.u32 2, %s15
      %v201 = vld [vmem:[%s193] sm:$0xff]
      %v202 = vld [vmem:[%s193 + $0x8] sm:$0xff]
      %v203 = vlaneseq
      %v204 = vshrl.u32 %v203, 7
      %v205 = vadd.s32 %v204, 8
      %vm206 = vcmp.lt.s32.totalorder %v204, 0
      %v207 = vsub.s32 0, %v204
      %v208 = vsel %vm206, %v207, %v204
      %v209 = vshrl.u32 %v208, 4
      %v210 = vand.u32 %v208, 15
      %v211 = vsub.s32 0, %v210
      %v212 = vsel %vm206, %v211, %v210
      %vm213 = vcmp.lt.s32.totalorder %v205, 0
      %v214 = vsub.s32 0, %v205
      %v215 = vsel %vm213, %v214, %v205
      %v216 = vshrl.u32 %v215, 4
      %v217 = vand.u32 %v215, 15
      %v218 = vsub.s32 0, %v217
      %v219 = vsel %vm213, %v218, %v217
      %vm220 = vcmp.ne.s32.totalorder %v212, 0
      %vm221 = vcmp.ne.s32.totalorder %v219, 0
      %vm222 = vcmp.lt.s32.totalorder %v212, 0
      %vm223 = vcmp.lt.s32.totalorder %v219, 0
      %vm224 = vmand %vm222, %vm220
      %vm225 = vmand %vm223, %vm221
      %v226 = vadd.s32 %v212, 16
      %v227 = vadd.s32 %v219, 16
      %v228 = vsel %vm224, %v226, %v212
      %v229 = vsel %vm225, %v227, %v219
      %vm230 = vcmp.eq.s32.totalorder %v228, 0
      %vm231 = vcmp.eq.s32.totalorder %v229, 0
      %vm232 = vcmp.eq.s32.totalorder %v228, 15
      %vm233 = vcmp.eq.s32.totalorder %v229, 15
      %v234 = vpack.c.bf16 %v202, %v201
      %v235 = vld [vmem:[%s1] sm:$0xf]
      %v236 = vld [vmem:[%s1 + $0x4] sm:$0xf]
      %v237 = vld [vmem:[%s1 + $0x8] sm:$0xf]
      %v238 = vld [vmem:[%s1 + $0xc] sm:$0xf]
      %v239 = vld [vmem:[%s1 + $0x10] sm:$0xf]
      %v240 = vld [vmem:[%s1 + $0x14] sm:$0xf]
      %v241 = vld [vmem:[%s1 + $0x18] sm:$0xf]
      %v242 = vld [vmem:[%s1 + $0x1c] sm:$0xf]
      %v243 = vld [vmem:[%s1 + $0x20] sm:$0xf]
      %v244 = vld [vmem:[%s1 + $0x24] sm:$0xf]
      %v245 = vld [vmem:[%s1 + $0x28] sm:$0xf]
      %v246 = vld [vmem:[%s1 + $0x2c] sm:$0xf]
      %v247 = vld [vmem:[%s1 + $0x30] sm:$0xf]
      %v248 = vld [vmem:[%s1 + $0x34] sm:$0xf]
      %v249 = vld [vmem:[%s1 + $0x38] sm:$0xf]
      %v250 = vld [vmem:[%s1 + $0x3c] sm:$0xf]
      %v267 = vunpack.c.l.b16 %v235
      %v268 = vunpack.c.l.b16 %v236
      %v269 = vunpack.c.l.b16 %v237
      %v270 = vunpack.c.l.b16 %v238
      %v271 = vunpack.c.l.b16 %v239
      %v272 = vunpack.c.l.b16 %v240
      %v273 = vunpack.c.l.b16 %v241
      %v274 = vunpack.c.l.b16 %v242
      %v275 = vunpack.c.l.b16 %v243
      %v276 = vunpack.c.l.b16 %v244
      %v277 = vunpack.c.l.b16 %v245
      %v278 = vunpack.c.l.b16 %v246
      %v279 = vunpack.c.l.b16 %v247
      %v280 = vunpack.c.l.b16 %v248
      %v281 = vunpack.c.l.b16 %v249
      %v282 = vunpack.c.l.b16 %v250
      %v283 = vpack.c.b16 %v268, %v267
      %v284 = vpack.c.b16 %v270, %v269
      %v285 = vpack.c.b16 %v272, %v271
      %v286 = vpack.c.b16 %v274, %v273
      %v287 = vpack.c.b16 %v276, %v275
      %v288 = vpack.c.b16 %v278, %v277
      %v289 = vpack.c.b16 %v280, %v279
      %v290 = vpack.c.b16 %v282, %v281
      %299 = vmatpush.bf16.msra.mxu0 %v290
      %300 = vmatpush.bf16.msra.mxu0 %v289
      %301 = vmatpush.bf16.msra.mxu0 %v288
      %302 = vmatpush.bf16.msra.mxu0 %v287
      %303 = vmatpush.bf16.msra.mxu0 %v286
      %304 = vmatpush.bf16.msra.mxu0 %v285
      %305 = vmatpush.bf16.msra.mxu0 %v284
      %306 = vmatpush.bf16.msra.mxu0 %v283
      %307 = vmatmul.bf16.gmra.mxu0 %v234
      %v308 = vpop.f32.mrf.mxu0
      %v309 = vadd.f32 0.0, %v308
      %v310 = vpop.f32.mrf.mxu0
      %v311 = vadd.f32 0.0, %v310
      %312 = vdwg.mxu0
      %s313 = scalar_lea.vmem %s1, 64
      %v314 = vld [vmem:[%s313] sm:$0xf]
      %v315 = vld [vmem:[%s313 + $0x4] sm:$0xf]
      %v316 = vld [vmem:[%s313 + $0x8] sm:$0xf]
      %v317 = vld [vmem:[%s313 + $0xc] sm:$0xf]
      %v318 = vld [vmem:[%s313 + $0x10] sm:$0xf]
      %v319 = vld [vmem:[%s313 + $0x14] sm:$0xf]
      %v320 = vld [vmem:[%s313 + $0x18] sm:$0xf]
      %v321 = vld [vmem:[%s313 + $0x1c] sm:$0xf]
      %v322 = vld [vmem:[%s313 + $0x20] sm:$0xf]
      %v323 = vld [vmem:[%s313 + $0x24] sm:$0xf]
      %v324 = vld [vmem:[%s313 + $0x28] sm:$0xf]
      %v325 = vld [vmem:[%s313 + $0x2c] sm:$0xf]
      %v326 = vld [vmem:[%s313 + $0x30] sm:$0xf]
      %v327 = vld [vmem:[%s313 + $0x34] sm:$0xf]
      %v328 = vld [vmem:[%s313 + $0x38] sm:$0xf]
      %v329 = vld [vmem:[%s313 + $0x3c] sm:$0xf]
      %s330 = scalar_lea.vmem %s1, 128
      %v331 = vld [vmem:[%s330] sm:$0xf]
      %v332 = vld [vmem:[%s330 + $0x4] sm:$0xf]
      %v333 = vld [vmem:[%s330 + $0x8] sm:$0xf]
      %v334 = vld [vmem:[%s330 + $0xc] sm:$0xf]
      %v335 = vld [vmem:[%s330 + $0x10] sm:$0xf]
      %v336 = vld [vmem:[%s330 + $0x14] sm:$0xf]
      %v337 = vld [vmem:[%s330 + $0x18] sm:$0xf]
      %v338 = vld [vmem:[%s330 + $0x1c] sm:$0xf]
      %v339 = vld [vmem:[%s330 + $0x20] sm:$0xf]
      %v340 = vld [vmem:[%s330 + $0x24] sm:$0xf]
      %v341 = vld [vmem:[%s330 + $0x28] sm:$0xf]
      %v342 = vld [vmem:[%s330 + $0x2c] sm:$0xf]
      %v343 = vld [vmem:[%s330 + $0x30] sm:$0xf]
      %v344 = vld [vmem:[%s330 + $0x34] sm:$0xf]
      %v345 = vld [vmem:[%s330 + $0x38] sm:$0xf]
      %v346 = vld [vmem:[%s330 + $0x3c] sm:$0xf]
      %v363 = vunpack.c.l.b16 %v331
      %v364 = vunpack.c.l.b16 %v332
      %v365 = vunpack.c.l.b16 %v333
      %v366 = vunpack.c.l.b16 %v334
      %v367 = vunpack.c.l.b16 %v335
      %v368 = vunpack.c.l.b16 %v336
      %v369 = vunpack.c.l.b16 %v337
      %v370 = vunpack.c.l.b16 %v338
      %v371 = vunpack.c.l.b16 %v339
      %v372 = vunpack.c.l.b16 %v340
      %v373 = vunpack.c.l.b16 %v341
      %v374 = vunpack.c.l.b16 %v342
      %v375 = vunpack.c.l.b16 %v343
      %v376 = vunpack.c.l.b16 %v344
      %v377 = vunpack.c.l.b16 %v345
      %v378 = vunpack.c.l.b16 %v346
      %v379 = vpack.c.b16 %v364, %v363
      %v380 = vpack.c.b16 %v366, %v365
      %v381 = vpack.c.b16 %v368, %v367
      %v382 = vpack.c.b16 %v370, %v369
      %v383 = vpack.c.b16 %v372, %v371
      %v384 = vpack.c.b16 %v374, %v373
      %v385 = vpack.c.b16 %v376, %v375
      %v386 = vpack.c.b16 %v378, %v377
      %395 = vmatpush.bf16.msra.mxu0 %v386
      %396 = vmatpush.bf16.msra.mxu0 %v385
      %397 = vmatpush.bf16.msra.mxu0 %v384
      %398 = vmatpush.bf16.msra.mxu0 %v383
      %399 = vmatpush.bf16.msra.mxu0 %v382
      %400 = vmatpush.bf16.msra.mxu0 %v381
      %401 = vmatpush.bf16.msra.mxu0 %v380
      %402 = vmatpush.bf16.msra.mxu0 %v379
      %403 = vmatmul.bf16.gmra.mxu0 %v234
      %v404 = vpop.f32.mrf.mxu0
      %v405 = vadd.f32 0.0, %v404
      %v406 = vpop.f32.mrf.mxu0
      %v407 = vadd.f32 0.0, %v406
      %408 = vdwg.mxu0
      %v409 = vrot.slane %v309, 7
      %v410 = vrot.slane %v311, 7
      %vm411 = vcmp.lt.s32.totalorder %v204, 1
      %v412 = vsel %vm411, %v409, %v410
      %v413 = vsel %vm411, %v410, %v409
      %v414 = vsel %vm230, 0.0, %v413
      %v415 = vsel %vm231, 0.0, %v412
      %v416 = vrot.slane %v405, 1
      %v417 = vrot.slane %v407, 1
      %vm418 = vcmp.lt.s32.totalorder %v204, 7
      %v419 = vsel %vm418, %v416, %v417
      %v420 = vsel %vm418, %v417, %v416
      %v421 = vsel %vm232, 0.0, %v419
      %v422 = vsel %vm233, 0.0, %v420
      %v439 = vunpack.c.l.b16 %v314
      %v440 = vunpack.c.l.b16 %v315
      %v441 = vunpack.c.l.b16 %v316
      %v442 = vunpack.c.l.b16 %v317
      %v443 = vunpack.c.l.b16 %v318
      %v444 = vunpack.c.l.b16 %v319
      %v445 = vunpack.c.l.b16 %v320
      %v446 = vunpack.c.l.b16 %v321
      %v447 = vunpack.c.l.b16 %v322
      %v448 = vunpack.c.l.b16 %v323
      %v449 = vunpack.c.l.b16 %v324
      %v450 = vunpack.c.l.b16 %v325
      %v451 = vunpack.c.l.b16 %v326
      %v452 = vunpack.c.l.b16 %v327
      %v453 = vunpack.c.l.b16 %v328
      %v454 = vunpack.c.l.b16 %v329
      %v455 = vpack.c.b16 %v440, %v439
      %v456 = vpack.c.b16 %v442, %v441
      %v457 = vpack.c.b16 %v444, %v443
      %v458 = vpack.c.b16 %v446, %v445
      %v459 = vpack.c.b16 %v448, %v447
      %v460 = vpack.c.b16 %v450, %v449
      %v461 = vpack.c.b16 %v452, %v451
      %v462 = vpack.c.b16 %v454, %v453
      %471 = vmatpush.bf16.msra.mxu0 %v462
      %472 = vmatpush.bf16.msra.mxu0 %v461
      %473 = vmatpush.bf16.msra.mxu0 %v460
      %474 = vmatpush.bf16.msra.mxu0 %v459
      %475 = vmatpush.bf16.msra.mxu0 %v458
      %476 = vmatpush.bf16.msra.mxu0 %v457
      %477 = vmatpush.bf16.msra.mxu0 %v456
      %478 = vmatpush.bf16.msra.mxu0 %v455
      %479 = vmatmul.bf16.gmra.mxu0 %v234
      %v480 = vpop.f32.mrf.mxu0
      %v481 = vadd.f32 %v414, %v480
      %v482 = vpop.f32.mrf.mxu0
      %v483 = vadd.f32 %v415, %v482
      %484 = vdwg.mxu0
      %v485 = vadd.f32 %v481, %v421
      %v486 = vadd.f32 %v483, %v422
      %v487 = vld [vmem:[%s3] sm:$0x1]
      %v488 = vperm.slane %v487, 0
      %v489 = vadd.f32 %v485, %v488
      %v490 = vadd.f32 %v486, %v488
      %v491 = vmax.f32 %v489, 0.0
      %v492 = vmax.f32 %v490, 0.0
      %v493 = vpack.c.bf16 %v492, %v491
      %v494 = vld [vmem:[%s2] sm:$0xf]
      %v495 = vld [vmem:[%s2 + $0x4] sm:$0xf]
      %v496 = vld [vmem:[%s2 + $0x8] sm:$0xf]
      %v497 = vld [vmem:[%s2 + $0xc] sm:$0xf]
      %v498 = vld [vmem:[%s2 + $0x10] sm:$0xf]
      %v499 = vld [vmem:[%s2 + $0x14] sm:$0xf]
      %v500 = vld [vmem:[%s2 + $0x18] sm:$0xf]
      %v501 = vld [vmem:[%s2 + $0x1c] sm:$0xf]
      %v502 = vld [vmem:[%s2 + $0x20] sm:$0xf]
      %v503 = vld [vmem:[%s2 + $0x24] sm:$0xf]
      %v504 = vld [vmem:[%s2 + $0x28] sm:$0xf]
      %v505 = vld [vmem:[%s2 + $0x2c] sm:$0xf]
      %v506 = vld [vmem:[%s2 + $0x30] sm:$0xf]
      %v507 = vld [vmem:[%s2 + $0x34] sm:$0xf]
      %v508 = vld [vmem:[%s2 + $0x38] sm:$0xf]
      %v509 = vld [vmem:[%s2 + $0x3c] sm:$0xf]
      %v526 = vunpack.c.l.b16 %v494
      %v527 = vunpack.c.l.b16 %v495
      %v528 = vunpack.c.l.b16 %v496
      %v529 = vunpack.c.l.b16 %v497
      %v530 = vunpack.c.l.b16 %v498
      %v531 = vunpack.c.l.b16 %v499
      %v532 = vunpack.c.l.b16 %v500
      %v533 = vunpack.c.l.b16 %v501
      %v534 = vunpack.c.l.b16 %v502
      %v535 = vunpack.c.l.b16 %v503
      %v536 = vunpack.c.l.b16 %v504
      %v537 = vunpack.c.l.b16 %v505
      %v538 = vunpack.c.l.b16 %v506
      %v539 = vunpack.c.l.b16 %v507
      %v540 = vunpack.c.l.b16 %v508
      %v541 = vunpack.c.l.b16 %v509
      %v542 = vpack.c.b16 %v527, %v526
      %v543 = vpack.c.b16 %v529, %v528
      %v544 = vpack.c.b16 %v531, %v530
      %v545 = vpack.c.b16 %v533, %v532
      %v546 = vpack.c.b16 %v535, %v534
      %v547 = vpack.c.b16 %v537, %v536
      %v548 = vpack.c.b16 %v539, %v538
      %v549 = vpack.c.b16 %v541, %v540
      %558 = vmatpush.bf16.msra.mxu0 %v549
      %559 = vmatpush.bf16.msra.mxu0 %v548
      %560 = vmatpush.bf16.msra.mxu0 %v547
      %561 = vmatpush.bf16.msra.mxu0 %v546
      %562 = vmatpush.bf16.msra.mxu0 %v545
      %563 = vmatpush.bf16.msra.mxu0 %v544
      %564 = vmatpush.bf16.msra.mxu0 %v543
      %565 = vmatpush.bf16.msra.mxu0 %v542
      %566 = vmatmul.bf16.gmra.mxu0 %v493
      %v567 = vpop.f32.mrf.mxu0
      %v568 = vadd.f32 0.0, %v567
      %v569 = vpop.f32.mrf.mxu0
      %v570 = vadd.f32 0.0, %v569
      %571 = vdwg.mxu0
      %s572 = scalar_lea.vmem %s2, 64
      %v573 = vld [vmem:[%s572] sm:$0xf]
      %v574 = vld [vmem:[%s572 + $0x4] sm:$0xf]
      %v575 = vld [vmem:[%s572 + $0x8] sm:$0xf]
      %v576 = vld [vmem:[%s572 + $0xc] sm:$0xf]
      %v577 = vld [vmem:[%s572 + $0x10] sm:$0xf]
      %v578 = vld [vmem:[%s572 + $0x14] sm:$0xf]
      %v579 = vld [vmem:[%s572 + $0x18] sm:$0xf]
      %v580 = vld [vmem:[%s572 + $0x1c] sm:$0xf]
      %v581 = vld [vmem:[%s572 + $0x20] sm:$0xf]
      %v582 = vld [vmem:[%s572 + $0x24] sm:$0xf]
      %v583 = vld [vmem:[%s572 + $0x28] sm:$0xf]
      %v584 = vld [vmem:[%s572 + $0x2c] sm:$0xf]
      %v585 = vld [vmem:[%s572 + $0x30] sm:$0xf]
      %v586 = vld [vmem:[%s572 + $0x34] sm:$0xf]
      %v587 = vld [vmem:[%s572 + $0x38] sm:$0xf]
      %v588 = vld [vmem:[%s572 + $0x3c] sm:$0xf]
      %s589 = scalar_lea.vmem %s2, 128
      %v590 = vld [vmem:[%s589] sm:$0xf]
      %v591 = vld [vmem:[%s589 + $0x4] sm:$0xf]
      %v592 = vld [vmem:[%s589 + $0x8] sm:$0xf]
      %v593 = vld [vmem:[%s589 + $0xc] sm:$0xf]
      %v594 = vld [vmem:[%s589 + $0x10] sm:$0xf]
      %v595 = vld [vmem:[%s589 + $0x14] sm:$0xf]
      %v596 = vld [vmem:[%s589 + $0x18] sm:$0xf]
      %v597 = vld [vmem:[%s589 + $0x1c] sm:$0xf]
      %v598 = vld [vmem:[%s589 + $0x20] sm:$0xf]
      %v599 = vld [vmem:[%s589 + $0x24] sm:$0xf]
      %v600 = vld [vmem:[%s589 + $0x28] sm:$0xf]
      %v601 = vld [vmem:[%s589 + $0x2c] sm:$0xf]
      %v602 = vld [vmem:[%s589 + $0x30] sm:$0xf]
      %v603 = vld [vmem:[%s589 + $0x34] sm:$0xf]
      %v604 = vld [vmem:[%s589 + $0x38] sm:$0xf]
      %v605 = vld [vmem:[%s589 + $0x3c] sm:$0xf]
      %v622 = vunpack.c.l.b16 %v590
      %v623 = vunpack.c.l.b16 %v591
      %v624 = vunpack.c.l.b16 %v592
      %v625 = vunpack.c.l.b16 %v593
      %v626 = vunpack.c.l.b16 %v594
      %v627 = vunpack.c.l.b16 %v595
      %v628 = vunpack.c.l.b16 %v596
      %v629 = vunpack.c.l.b16 %v597
      %v630 = vunpack.c.l.b16 %v598
      %v631 = vunpack.c.l.b16 %v599
      %v632 = vunpack.c.l.b16 %v600
      %v633 = vunpack.c.l.b16 %v601
      %v634 = vunpack.c.l.b16 %v602
      %v635 = vunpack.c.l.b16 %v603
      %v636 = vunpack.c.l.b16 %v604
      %v637 = vunpack.c.l.b16 %v605
      %v638 = vpack.c.b16 %v623, %v622
      %v639 = vpack.c.b16 %v625, %v624
      %v640 = vpack.c.b16 %v627, %v626
      %v641 = vpack.c.b16 %v629, %v628
      %v642 = vpack.c.b16 %v631, %v630
      %v643 = vpack.c.b16 %v633, %v632
      %v644 = vpack.c.b16 %v635, %v634
      %v645 = vpack.c.b16 %v637, %v636
      %654 = vmatpush.bf16.msra.mxu0 %v645
      %655 = vmatpush.bf16.msra.mxu0 %v644
      %656 = vmatpush.bf16.msra.mxu0 %v643
      %657 = vmatpush.bf16.msra.mxu0 %v642
      %658 = vmatpush.bf16.msra.mxu0 %v641
      %659 = vmatpush.bf16.msra.mxu0 %v640
      %660 = vmatpush.bf16.msra.mxu0 %v639
      %661 = vmatpush.bf16.msra.mxu0 %v638
      %662 = vmatmul.bf16.gmra.mxu0 %v493
      %v663 = vpop.f32.mrf.mxu0
      %v664 = vadd.f32 0.0, %v663
      %v665 = vpop.f32.mrf.mxu0
      %v666 = vadd.f32 0.0, %v665
      %667 = vdwg.mxu0
      %v668 = vrot.slane %v568, 7
      %v669 = vrot.slane %v570, 7
      %v670 = vsel %vm411, %v668, %v669
      %v671 = vsel %vm411, %v669, %v668
      %v672 = vsel %vm230, 0.0, %v671
      %v673 = vsel %vm231, 0.0, %v670
      %v674 = vrot.slane %v664, 1
      %v675 = vrot.slane %v666, 1
      %v676 = vsel %vm418, %v674, %v675
      %v677 = vsel %vm418, %v675, %v674
      %v678 = vsel %vm232, 0.0, %v676
      %v679 = vsel %vm233, 0.0, %v677
      %v696 = vunpack.c.l.b16 %v573
      %v697 = vunpack.c.l.b16 %v574
      %v698 = vunpack.c.l.b16 %v575
      %v699 = vunpack.c.l.b16 %v576
      %v700 = vunpack.c.l.b16 %v577
      %v701 = vunpack.c.l.b16 %v578
      %v702 = vunpack.c.l.b16 %v579
      %v703 = vunpack.c.l.b16 %v580
      %v704 = vunpack.c.l.b16 %v581
      %v705 = vunpack.c.l.b16 %v582
      %v706 = vunpack.c.l.b16 %v583
      %v707 = vunpack.c.l.b16 %v584
      %v708 = vunpack.c.l.b16 %v585
      %v709 = vunpack.c.l.b16 %v586
      %v710 = vunpack.c.l.b16 %v587
      %v711 = vunpack.c.l.b16 %v588
      %v712 = vpack.c.b16 %v697, %v696
      %v713 = vpack.c.b16 %v699, %v698
      %v714 = vpack.c.b16 %v701, %v700
      %v715 = vpack.c.b16 %v703, %v702
      %v716 = vpack.c.b16 %v705, %v704
      %v717 = vpack.c.b16 %v707, %v706
      %v718 = vpack.c.b16 %v709, %v708
      %v719 = vpack.c.b16 %v711, %v710
      %728 = vmatpush.bf16.msra.mxu0 %v719
      %729 = vmatpush.bf16.msra.mxu0 %v718
      %730 = vmatpush.bf16.msra.mxu0 %v717
      %731 = vmatpush.bf16.msra.mxu0 %v716
      %732 = vmatpush.bf16.msra.mxu0 %v715
      %733 = vmatpush.bf16.msra.mxu0 %v714
      %734 = vmatpush.bf16.msra.mxu0 %v713
      %735 = vmatpush.bf16.msra.mxu0 %v712
      %736 = vmatmul.bf16.gmra.mxu0 %v493
      %v737 = vpop.f32.mrf.mxu0
      %v738 = vadd.f32 %v672, %v737
      %v739 = vpop.f32.mrf.mxu0
      %v740 = vadd.f32 %v673, %v739
      %741 = vdwg.mxu0
      %v742 = vadd.f32 %v738, %v678
      %v743 = vadd.f32 %v740, %v679
      %v744 = vld [vmem:[%s3 + $0x1] sm:$0x1]
      %v745 = vperm.slane %v744, 0
      %v746 = vadd.f32 %v742, %v745
      %v747 = vadd.f32 %v743, %v745
      %v748 = vadd.f32 %v746, %v201
      %v749 = vadd.f32 %v747, %v202
      %v750 = vmax.f32 %v748, 0.0
      %v751 = vmax.f32 %v749, 0.0
      %752 = vst [vmem:[%s199] sm:$0xff] %v750
      %753 = vst [vmem:[%s199 + $0x8] sm:$0xff] %v751
      %s754 = smul.u32 2, %s15
      %p755 = scmp.lt.s32.totalorder %s754, 3
      %s756 = scalar_select %p755, %s754, 3
      %s757 = smul.addr %s756, 8
      %s758 = scalar_lea.vmem %s4, %s757
      // Predicated region
      $region37: #{basic_block_forward.1} parent=35 // pred_check
        %p759 = pneg %p122
      $region38: #{basic_block_forward.1} parent=35 // pred_check_branch
        %761 = sbr.rel (%p759) target = $region40
      $region39: #{basic_block_forward.1} parent=35 // pred_region
        %s762 = smul.u32 2, %s15
      $region40: #{basic_block_forward.1} parent=35 // pred_fallthru
        _
    $region36: #{basic_block_forward.1} parent=5 // pred_fallthru
      _
    %p763 = scmp.le.s32.totalorder 2, %s10
    // Predicated region
    $region41: #{basic_block_forward.1} parent=5 // pred_check
      %p764 = pneg %p763
    $region42: #{basic_block_forward.1} parent=5 // pred_check_branch
      %766 = sbr.rel (%p764) target = $region44
    $region43: #{basic_block_forward.1} parent=5 // pred_region
      %s767 = ssub.s32 %s10, 2
      // Predicated region
      $region45: #{basic_block_forward.1} parent=43 // pred_check
        %p768 = pneg %p128
      $region46: #{basic_block_forward.1} parent=43 // pred_check_branch
        %770 = sbr.rel (%p768) target = $region48
      $region47: #{basic_block_forward.1} parent=43 // pred_region
        %s771 = smul.u32 2, %s16
        %p772 = scmp.lt.s32.totalorder %s771, 3
        %s773 = scalar_select %p772, %s771, 3
        %s774 = smul.addr %s773, 8
        %s775 = scalar_lea.vmem %s4, %s774
      $region48: #{basic_block_forward.1} parent=43 // pred_fallthru
        _
    $region44: #{basic_block_forward.1} parent=5 // pred_fallthru
      _
  $region6: #{basic_block_forward.1} parent=0 // loop_footer
    %s14 = sadd.s32 1, %s10
  $region7: #{basic_block_forward.1} parent=0 // loop_footer_branch
    %9 = sbr.rel target = $region3
  $region8: #{basic_block_forward.1} parent=0 // loop_exit
    _

</llo_original>
